<compile_context>
chip_gen: v5e
topology: v5e:2x2
jax: 0.10.0
libtpu: 0.0.40
codegen_flags: <defaults>
</compile_context>

<pallas_src>
import functools
import math

import jax
import jax.numpy as jnp
from jax.experimental import pallas as pl
from jax.experimental.pallas import tpu as pltpu

LANE = 128
SUBLANE = 8
_TARGET_BLOCK_BYTES = 2 << 20      # ~2 MiB per x block -> 4x double buffers ~= 8 MiB
_PE_RESIDENT_MAX_BYTES = 2 << 20   # keep pe resident in VMEM when it is at most this big
_VMEM_LIMIT_BYTES = 32 << 20       # explicit ceiling: > v5e's 16 MiB default, < v7x's 64 MiB physical


def make_positional_encoding(d_model, max_len=256, dtype=jnp.float32):
    """Replicates the PyTorch buffer: pe[:, 0::2] = sin, pe[:, 1::2] = cos (even d_model)."""
    assert d_model % 2 == 0, "d_model must be even (same assumption as the PyTorch module)"
    position = jnp.arange(max_len, dtype=jnp.float32)[:, None]                 # (L, 1)
    div_term = jnp.exp(jnp.arange(0, d_model, 2, dtype=jnp.float32)
                       * (-math.log(10000.0) / d_model))                       # (D/2,)
    ang = position * div_term                                                  # (L, D/2)
    pe = jnp.stack([jnp.sin(ang), jnp.cos(ang)], axis=-1).reshape(max_len, d_model)
    return pe.astype(dtype)


# ---------------------------------------------------------------------------
# Kernels
# ---------------------------------------------------------------------------
def _posenc_resident_kernel(x_ref, pe_ref, o_ref, *, n_pe_rows):
    """x/o block: (tB, tF); pe_ref: (n_pe_rows, tF), resident in VMEM for the whole grid.

    Flat block i needs pe_flat[(i*tF) % P : ... + tF] == row (i % n_pe_rows) of pe_ref
    (tF divides P by construction, so a row never wraps).
    """
    if n_pe_rows == 1:
        row = 0
    else:
        row = pl.program_id(0) % n_pe_rows
    o_ref[...] = x_ref[...] + pe_ref[row][None, :]


def _posenc_streamed_kernel(x_ref, pos_ref, o_ref):
    """Fallback: pos block (tF,) streamed with the same flat index_map as x."""
    o_ref[...] = x_ref[...] + pos_ref[...][None, :]


# ---------------------------------------------------------------------------
# Tile selection (VMEM-budget driven, not gcd driven)
# ---------------------------------------------------------------------------
def _round_down(x, m):
    return (x // m) * m


def _choose_tiles(B, F, itemsize, pe_len=None):
    """Pick (tB, tF) for a (B, F) streaming elementwise add.

    tF is a multiple of 128 (lane-dense stores); when pe_len is given (resident-pe
    path) tF must also divide pe_len so an in-kernel pe row never wraps.
    tB is the full batch unless that alone busts the per-block budget, in which case
    it is a multiple of 8.  Returns None if the resident-pe constraints can't be met.
    """
    tB = B
    if B * LANE * itemsize > _TARGET_BLOCK_BYTES:
        # Only for very large batches: split B across the grid in multiples of 8.
        tB = max(SUBLANE, _round_down(_TARGET_BLOCK_BYTES // (LANE * itemsize), SUBLANE))
        tB = min(tB, _round_down(B, SUBLANE))
    budget_f = max(LANE, _round_down(_TARGET_BLOCK_BYTES // (tB * itemsize), LANE))

    if F < LANE:
        # Tiny flattened axis: single full-extent block. Use the streamed path so we
        # never need a wrapping / non-divisible pe slice.
        return None if pe_len is not None else (tB, F)

    cap = min(budget_f, _round_down(F, LANE))
    if pe_len is None:
        return tB, cap

    t = cap
    while t >= LANE:
        if pe_len % t == 0:
            return tB, t
        t -= LANE
    return None


# ---------------------------------------------------------------------------
# Forward wrapper
# ---------------------------------------------------------------------------
def positional_encoding_forward(x, pe, donate_x=False):
    """x: (B, S, D); pe: (max_len, D) registered buffer. Returns x + PE (PyTorch wrap semantics)."""
    B, S, D = x.shape
    max_len = pe.shape[0]
    itemsize = jnp.dtype(x.dtype).itemsize

    # Flatten (S, D) -> F so stores are lane-dense even for small d_model. The PyTorch
    # wrap (repeat every max_len rows) becomes `flat_index % P` with P = max_len * D.
    F = S * D
    P = max_len * D
    x2 = x.reshape(B, F)
    # Pre-cast pe once (halves pe DMA bytes for bf16 x, no per-tile convert in-kernel).
    # TODO(synk): PyTorch promotes bf16/f16 x + f32 pe to f32; we keep x.dtype instead.
    pe_flat = pe.astype(x.dtype).reshape(P)

    pe_resident = P * itemsize <= _PE_RESIDENT_MAX_BYTES
    tiles = _choose_tiles(B, F, itemsize, pe_len=P if pe_resident else None)
    if tiles is None:
        pe_resident = False
        tiles = _choose_tiles(B, F, itemsize, pe_len=None)
    tB, tF = tiles

    n_f = pl.cdiv(F, tF)
    n_b = pl.cdiv(B, tB)
    grid = (n_f, n_b)                               # batch innermost; flat axis outermost

    # v7x: both axes parallel -> shard across the 2 TensorCores; no-op on v5e/v6e.
    compiler_params = pltpu.CompilerParams(
        dimension_semantics=("parallel", "parallel"),
        vmem_limit_bytes=_VMEM_LIMIT_BYTES,         # tiles are sized to use far less than this
    )
    out_shape = jax.ShapeDtypeStruct((B, F), x.dtype)
    x_spec = pl.BlockSpec((tB, tF), lambda i, b: (b, i))
    o_spec = pl.BlockSpec((tB, tF), lambda i, b: (b, i))
    io_aliases = {0: 0} if donate_x else {}

    if pe_resident:
        n_pe_rows = P // tF                         # tF | P by construction
        pe_2d = pe_flat.reshape(n_pe_rows, tF)
        pe_spec = pl.BlockSpec((n_pe_rows, tF), lambda i, b: (0, 0))   # resident: DMA'd once
        out = pl.pallas_call(
            functools.partial(_posenc_resident_kernel, n_pe_rows=n_pe_rows),
            grid=grid,
            in_specs=[x_spec, pe_spec],
            out_specs=o_spec,
            out_shape=out_shape,
            input_output_aliases=io_aliases,
            compiler_params=compiler_params,
        )(x2, pe_2d)
    else:
        # Fallback: materialize the wrapped positional stream once (S*D elements, tiny
        # vs B*S*D) and stream it with the same flat index_map as x (no divisibility
        # constraints, cdiv grid with masked partial last block).
        if S > max_len:
            reps = -(-S // max_len)
            pos_flat = jnp.tile(pe_flat, reps)[:F]
        else:
            pos_flat = pe_flat[:F]
        pos_spec = pl.BlockSpec((tF,), lambda i, b: (i,))   # constant across innermost batch axis
        out = pl.pallas_call(
            _posenc_streamed_kernel,
            grid=grid,
            in_specs=[x_spec, pos_spec],
            out_specs=o_spec,
            out_shape=out_shape,
            input_output_aliases=io_aliases,
            compiler_params=compiler_params,
        )(x2, pos_flat)

    return out.reshape(B, S, D)


def positional_encoding_ref(x, pe):
    """Pure-JAX reference mirroring the PyTorch forward exactly."""
    _, S, _ = x.shape
    max_len = pe.shape[0]
    if S > max_len:
        reps = -(-S // max_len)
        pos = jnp.tile(pe, (reps, 1))[:S]
    else:
        pos = pe[:S]
    return x + pos[None].astype(x.dtype)


if __name__ == "__main__":
    key = jax.random.PRNGKey(0)

    def check(x, pe):
        out = jax.block_until_ready(positional_encoding_forward(x, pe))
        ref = positional_encoding_ref(x, pe)
        assert out.shape == x.shape, (out.shape, x.shape)
        assert jnp.allclose(out, ref, atol=1e-6, rtol=1e-6), float(jnp.max(jnp.abs(out - ref)))

    # Primary small case (seq=8, hidden=32): flattened lane-dense path, resident pe.
    B, S, D, L = 2, 8, 32, 64
    x = jax.random.normal(key, (B, S, D), jnp.float32)
    check(x, make_positional_encoding(D, max_len=L))

    # Wrap-around case: seq_len > max_len (exercises the modular pe-row index).
    B2, S2, D2, L2 = 2, 384, 128, 256
    x2 = jax.random.normal(jax.random.fold_in(key, 1), (B2, S2, D2), jnp.float32)
    check(x2, make_positional_encoding(D2, max_len=L2))

    # Ragged case: S*D not a multiple of the tile -> masked partial last block.
    B3, S3, D3, L3 = 2, 100, 96, 256
    x3 = jax.random.normal(jax.random.fold_in(key, 2), (B3, S3, D3), jnp.float32)
    check(x3, make_positional_encoding(D3, max_len=L3))

    # Tiny/awkward case (F < 128, P not lane-aligned): streamed-pos fallback + wrap.
    B4, S4, D4, L4 = 2, 12, 6, 10
    x4 = jax.random.normal(jax.random.fold_in(key, 3), (B4, S4, D4), jnp.float32)
    check(x4, make_positional_encoding(D4, max_len=L4))

    print("KERNEL_OK")
</pallas_src>

<mosaic_0001>
module attributes {stable_mosaic.version = 11 : i64} {
  func.func @_posenc_resident_kernel(%arg0: i32, %arg1: i32, %arg2: memref<2x256xf32, #tpu.memory_space<vmem>>, %arg3: memref<8x256xf32, #tpu.memory_space<vmem>>, %arg4: memref<2x256xf32, #tpu.memory_space<vmem>>) attributes {dimension_semantics = [#tpu.dimension_semantics<parallel>, #tpu.dimension_semantics<parallel>], iteration_bounds = array<i64: 1, 1>, scalar_prefetch = 0 : i64, scratch_operands = 0 : i64, tpu.core_type = #tpu.core_type<tc>, window_params = [{transform_indices = @transform_0, window_bounds = array<i64: 2, 256>}, {pipeline_mode = #tpu.pipeline_mode<synchronous>, transform_indices = @transform_1, window_bounds = array<i64: 8, 256>}, {transform_indices = @transform_2, window_bounds = array<i64: 2, 256>}]} {
    %c8_i32 = arith.constant 8 : i32
    %c0_i32 = arith.constant 0 : i32
    %0 = arith.cmpi eq, %c8_i32, %c0_i32 : i32
    %c1_i32 = arith.constant 1 : i32
    %1 = arith.select %0, %c1_i32, %c8_i32 : i32
    %2 = arith.remsi %arg0, %1 : i32
    %c0_i32_0 = arith.constant 0 : i32
    %3 = arith.cmpi ne, %2, %c0_i32_0 : i32
    %c0_i32_1 = arith.constant 0 : i32
    %4 = arith.cmpi slt, %2, %c0_i32_1 : i32
    %c0_i32_2 = arith.constant 0 : i32
    %5 = arith.cmpi slt, %1, %c0_i32_2 : i32
    %6 = arith.xori %4, %5 : i1
    %7 = arith.andi %6, %3 : i1
    %8 = arith.addi %2, %1 : i32
    %9 = arith.select %7, %8, %2 : i32
    %c0 = arith.constant 0 : index
    %c0_3 = arith.constant 0 : index
    %10 = vector.load %arg2[%c0, %c0_3] : memref<2x256xf32, #tpu.memory_space<vmem>>, vector<2x256xf32>
    %11 = arith.index_cast %9 : i32 to index
    %c0_4 = arith.constant 0 : index
    %12 = vector.load %arg3[%11, %c0_4] : memref<8x256xf32, #tpu.memory_space<vmem>>, vector<1x256xf32>
    %13 = vector.shape_cast %12 : vector<1x256xf32> to vector<256xf32>
    %14 = vector.shape_cast %13 : vector<256xf32> to vector<1x256xf32>
    %15 = vector.broadcast %14 : vector<1x256xf32> to vector<2x256xf32>
    %16 = arith.addf %10, %15 : vector<2x256xf32>
    %c0_5 = arith.constant 0 : index
    %c0_6 = arith.constant 0 : index
    %17 = vector.load %arg4[%c0_5, %c0_6] : memref<2x256xf32, #tpu.memory_space<vmem>>, vector<2x256xf32>
    tpu.vector_store %arg4[%c0_5, %c0_6], %16 {strides = array<i32>} : memref<2x256xf32, #tpu.memory_space<vmem>>, vector<2x256xf32>,
    return
  }
  func.func @transform_0(%arg0: i32, %arg1: i32) -> (i32, i32) {
    %c0_i32 = arith.constant 0 : i32
    return %arg1, %arg0 : i32, i32
  }
  func.func @transform_1(%arg0: i32, %arg1: i32) -> (i32, i32) {
    %c0_i32 = arith.constant 0 : i32
    %c0_i32_0 = arith.constant 0 : i32
    %c0_i32_1 = arith.constant 0 : i32
    return %c0_i32, %c0_i32_0 : i32, i32
  }
  func.func @transform_2(%arg0: i32, %arg1: i32) -> (i32, i32) {
    %c0_i32 = arith.constant 0 : i32
    return %arg1, %arg0 : i32, i32
  }
}

</mosaic_0001>

<llo_original>
// kernel: tpu_custom_call.1
$region0: #{tpu_custom_call.1}
  #allocation0 [shape = 'u32[]', space=smem, size = 0x4, offset = 0x4, fixed_abs, tag = 'smem constant byte address 0x4 - core index']
  #allocation1 [shape = 'u32[72,128]{1,0:T(1,128)}', space=vmem, size = 0x9000, scoped, tag = 'internal scratch']
  %s0 = inlined_call_operand.hbm [shape: f32[2,256], index: 0, kind: input, shape index: {}]
  %s1 = inlined_call_operand.hbm [shape: f32[8,256], index: 1, kind: input, shape index: {}]
  %s2 = inlined_call_operand.hbm [shape: f32[2,256], index: 2, kind: output, shape index: {}]
  %s3 = sld [smem:[#allocation0]]
  $region26: #{tpu_custom_call.1} parent=0
    _
  %s5 = ssub.s32 1, %s3
  %s6 = scalar_select 0, %s5, %s3
  $region1: #{tpu_custom_call.1} parent=0
    #allocation2 [shape = 'u8[2048]{0}', space=vmem, size = 0x800, scoped, tag = 'input window, operand 0, single buffered']
    #allocation3 [shape = 's32[1]{0}', space=sflag, size = 0x4, scoped, tag = 'scoped memory for tpu_custom_call.1']
    #allocation4 [shape = 's32[1]{0}', space=sflag, size = 0x4, scoped, tag = 'scoped memory for tpu_custom_call.1']
    #allocation5 [shape = 'u8[8192]{0}', space=vmem, size = 0x2000, scoped, tag = 'input window, operand 1, single buffered']
    #allocation6 [shape = 's32[1]{0}', space=sflag, size = 0x4, scoped, tag = 'scoped memory for tpu_custom_call.1']
    #allocation7 [shape = 'u8[2048]{0}', space=vmem, size = 0x800, scoped, tag = 'output window, operand 0, single buffered']
    %7 = vsyncpa [#allocation3], 0
    %8 = vsyncpa [#allocation6], 0
    %9 = vsyncpa [#allocation4], 0
    // Predicated region
    $region2: #{tpu_custom_call.1} parent=1 // pred_check
      _
    $region3: #{tpu_custom_call.1} parent=1 // pred_check_branch
      %11 = sbr.rel (0) target = $region5
    $region4: #{tpu_custom_call.1} parent=1 // pred_region
      %13 = vsyncadd [#allocation3], 0
      %s15 = sshll.u32 %s0, 4
      %s16 = int_to_ptr.hbm [resolvable:$true] %s15
      %s17 = sshll.u32 [#allocation2], 4
      %s18 = int_to_ptr.vmem [resolvable:$true] %s17
      %20 = dma.hbm_to_vmem [thread:$0]  %s16, 64, %s18, [#allocation3]
    $region5: #{tpu_custom_call.1} parent=1 // pred_fallthru
      _
    // Predicated region
    $region6: #{tpu_custom_call.1} parent=1 // pred_check
      _
    $region7: #{tpu_custom_call.1} parent=1 // pred_check_branch
      %22 = sbr.rel (0) target = $region9
    $region8: #{tpu_custom_call.1} parent=1 // pred_region
      %24 = vsyncadd [#allocation6], 0
      %s26 = sshll.u32 %s1, 4
      %s27 = int_to_ptr.hbm [resolvable:$true] %s26
      %s28 = sshll.u32 [#allocation5], 4
      %s29 = int_to_ptr.vmem [resolvable:$true] %s28
      %31 = dma.hbm_to_vmem [thread:$0]  %s27, 256, %s29, [#allocation6]
    $region9: #{tpu_custom_call.1} parent=1 // pred_fallthru
      _
    // Predicated region
    $region10: #{tpu_custom_call.1} parent=1 // pred_check
      _
    $region11: #{tpu_custom_call.1} parent=1 // pred_check_branch
      %33 = sbr.rel (0) target = $region13
    $region12: #{tpu_custom_call.1} parent=1 // pred_region
      %35 = dma.done [#allocation3], 64
    $region13: #{tpu_custom_call.1} parent=1 // pred_fallthru
      _
    // Predicated region
    $region14: #{tpu_custom_call.1} parent=1 // pred_check
      _
    $region15: #{tpu_custom_call.1} parent=1 // pred_check_branch
      %37 = sbr.rel (0) target = $region17
    $region16: #{tpu_custom_call.1} parent=1 // pred_region
      %39 = dma.done [#allocation6], 256
    $region17: #{tpu_custom_call.1} parent=1 // pred_fallthru
      _
    %s40 = ssub.s32 0, 0
    %s41 = ssub.s32 0, 0
    %p42 = scmp.ne.s32.totalorder 0, 0
    %p43 = scmp.lt.s32.totalorder 0, 0
    %p44 = pnand %p43, %p42
    %p45 = pneg %p44
    %s46 = sadd.s32 0, 8
    %s47 = scalar_select %p45, %s46, 0
    %v48 = vld [vmem:[#allocation2] sm:$0xf]
    %s49 = sshra.s32 %s47, 3
    %s50 = sand.u32 %s47, 7
    %s51 = sshra.s32 %s47, 3
    %s52 = sand.u32 %s47, 7
    %s53 = smul.u32 %s49, 2
    %s54 = smul.u32 %s53, 8
    %s55 = sadd.s32 %s54, %s52
    %s56 = scalar_lea.vmem [#allocation5], %s55
    %v57 = vld [vmem:[%s56] ss:$8 sm:$0x3]
    %v59 = vperm.slane %v57, 0
    %v60 = vperm.slane %v57, 1
    %v61 = vrot.slane %v60, 6
    %vm62 = vcmask 1041408
    %v63 = vsel %vm62, %v59, %v61
    %v65 = vadd.f32 %v48, %v63
    %66 = vst [vmem:[#allocation7] sm:$0xf] %v65
    // Predicated region
    $region18: #{tpu_custom_call.1} parent=1 // pred_check
      _
    $region19: #{tpu_custom_call.1} parent=1 // pred_check_branch
      %68 = sbr.rel (0) target = $region21
    $region20: #{tpu_custom_call.1} parent=1 // pred_region
      %70 = vsyncadd [#allocation4], 0
      %s72 = sshll.u32 [#allocation7], 4
      %s73 = int_to_ptr.vmem [resolvable:$true] %s72
      %s74 = sshll.u32 %s2, 4
      %s75 = int_to_ptr.hbm [resolvable:$true] %s74
      %77 = dma.vmem_to_hbm [thread:$0]  %s73, 64, %s75, [#allocation4]
    $region21: #{tpu_custom_call.1} parent=1 // pred_fallthru
      _
    // Predicated region
    $region22: #{tpu_custom_call.1} parent=1 // pred_check
      _
    $region23: #{tpu_custom_call.1} parent=1 // pred_check_branch
      %79 = sbr.rel (0) target = $region25
    $region24: #{tpu_custom_call.1} parent=1 // pred_region
      %81 = dma.done [#allocation4], 64
    $region25: #{tpu_custom_call.1} parent=1 // pred_fallthru
      _
    %82 = vsyncpa [#allocation3], 1
    %83 = vsyncpa [#allocation6], 1
    %84 = vsyncpa [#allocation4], 1

</llo_original>
